<compile_context>
chip_gen: v7x
topology: tpu7x:2x2x1
jax: 0.10.0
libtpu: 0.0.40
codegen_flags: <defaults>
</compile_context>

<pallas_src>
import jax
import jax.numpy as jnp
import numpy as np
from jax import lax
from jax.experimental import pallas as pl
from jax.experimental.pallas import tpu as pltpu


def _cosine_kernel(x1_ref, x2_ref, rn1_ref, rn2_ref, o_ref):
    """Grid = (M//tm, N//tn, D//tk); k (feature) axis is the reduction axis.

    Accumulates x1 @ x2.T directly into the k-invariant f32 output block, then
    scales by the precomputed inverse norms on the last k step.
    """
    k = pl.program_id(2)

    @pl.when(k == 0)
    def _init():
        o_ref[...] = jnp.zeros_like(o_ref)

    # MXU: contract on the last dim of both operands (no transpose / relayout),
    # native input dtype, f32 accumulation.
    o_ref[...] += lax.dot_general(
        x1_ref[...], x2_ref[...],
        dimension_numbers=(((1,), (1,)), ((), ())),
        preferred_element_type=jnp.float32)

    @pl.when(k == pl.num_programs(2) - 1)
    def _finalize():
        # (tm, 1) * (1, tn) broadcast -> (tm, tn) scale; norms hoisted outside.
        o_ref[...] = o_ref[...] * (rn1_ref[...] * rn2_ref[...])


def cosine_similarity(x1, x2, *, tm=256, tn=256, tk=512):
    """x1: (M, D), x2: (N, D) -> (M, N) float32 cosine similarity matrix."""
    M, D = x1.shape
    N, D2 = x2.shape
    assert D == D2, "feature dims must match"

    # Clamp tiles to the full dims for small problems.
    tm = min(tm, M)
    tn = min(tn, N)
    tk = min(tk, D)

    # Keep at least 2 (i, j) blocks when possible so v7x's two TensorCores both
    # get work (the parallel grid axes are what shard across cores).
    while ((M // tm) * (N // tn) < 2 and tm > 128 and tm % 2 == 0
           and M % (tm // 2) == 0):
        tm //= 2

    # TODO(synk): no padding/masking path — shapes must tile evenly.
    assert M % tm == 0 and N % tn == 0 and D % tk == 0, "shapes must tile evenly"

    grid = (M // tm, N // tn, D // tk)

    # Inverse row norms precomputed once in f32 (matches the PyTorch formula,
    # which has no eps clamp). Extra HBM traffic is only (M + N) * 4 bytes.
    x1f = x1.astype(jnp.float32)
    x2f = x2.astype(jnp.float32)
    rn1 = (1.0 / jnp.sqrt(jnp.sum(x1f * x1f, axis=1)))[:, None]   # (M, 1)
    rn2 = (1.0 / jnp.sqrt(jnp.sum(x2f * x2f, axis=1)))[None, :]   # (1, N)

    itemsize = x1.dtype.itemsize
    # Double-buffered input tiles + double-buffered f32 output tile + norms.
    est_vmem = (2 * (tm * tk + tn * tk) * itemsize
                + 2 * tm * tn * 4
                + 2 * (tm + tn) * 4)
    vmem_limit = None if est_vmem <= (32 << 20) else min(est_vmem * 2, 100 << 20)

    cost = pl.CostEstimate(
        flops=2 * M * N * D,
        transcendentals=0,
        bytes_accessed=(M * D * itemsize * (N // tn)     # x1 re-read per j block
                        + N * D * itemsize * (M // tm)   # x2 re-read per i block
                        + M * N * 4                      # output writeback
                        + (M + N) * 4),                  # inverse norms
    )

    return pl.pallas_call(
        _cosine_kernel,
        out_shape=jax.ShapeDtypeStruct((M, N), jnp.float32),
        grid_spec=pltpu.PrefetchScalarGridSpec(
            num_scalar_prefetch=0,
            grid=grid,
            in_specs=[
                pl.BlockSpec((tm, tk), lambda i, j, k: (i, k)),   # x1 tile
                pl.BlockSpec((tn, tk), lambda i, j, k: (j, k)),   # x2 tile
                pl.BlockSpec((tm, 1), lambda i, j, k: (i, 0)),    # 1/||x1|| col
                pl.BlockSpec((1, tn), lambda i, j, k: (0, j)),    # 1/||x2|| row
            ],
            out_specs=pl.BlockSpec((tm, tn), lambda i, j, k: (i, j)),
        ),
        compiler_params=pltpu.CompilerParams(
            dimension_semantics=("parallel", "parallel", "arbitrary"),
            vmem_limit_bytes=vmem_limit,
        ),
        cost_estimate=cost,
    )(x1, x2, rn1, rn2)


if __name__ == "__main__":
    key = jax.random.PRNGKey(0)
    k1, k2 = jax.random.split(key)

    # Small shapes consistent with forward(): x1 (M, D), x2 (N, D).
    # D=1024 exercises the k-reduction loop (2 steps at tk=512); the tile
    # heuristic splits M into 2 parallel blocks.
    M, N, D = 256, 256, 1024
    x1 = jax.random.normal(k1, (M, D), dtype=jnp.float32)
    x2 = jax.random.normal(k2, (N, D), dtype=jnp.float32)

    out = cosine_similarity(x1, x2)
    out = jax.block_until_ready(out)

    # Reference (plain JAX) check of the exact PyTorch semantics.
    x = x1 @ x2.T
    denom = (jnp.linalg.norm(x1, axis=1)[:, None] @
             jnp.linalg.norm(x2, axis=1)[None, :])
    ref = x * (1.0 / denom)
    assert np.allclose(np.asarray(out), np.asarray(ref), rtol=5e-4, atol=1e-4)

    print("KERNEL_OK")
</pallas_src>

<mosaic_0001>
module attributes {stable_mosaic.version = 11 : i64} {
  func.func @_cosine_kernel(%arg0: i32, %arg1: i32, %arg2: i32, %arg3: memref<128x512xf32, #tpu.memory_space<vmem>>, %arg4: memref<256x512xf32, #tpu.memory_space<vmem>>, %arg5: memref<128x1xf32, #tpu.memory_space<vmem>>, %arg6: memref<1x256xf32, #tpu.memory_space<vmem>>, %arg7: memref<128x256xf32, #tpu.memory_space<vmem>>) attributes {dimension_semantics = [#tpu.dimension_semantics<parallel>, #tpu.dimension_semantics<parallel>, #tpu.dimension_semantics<arbitrary>], iteration_bounds = array<i64: 2, 1, 2>, scalar_prefetch = 0 : i64, scratch_operands = 0 : i64, tpu.core_type = #tpu.core_type<tc>, window_params = [{transform_indices = @transform_0, window_bounds = array<i64: 128, 512>}, {transform_indices = @transform_1, window_bounds = array<i64: 256, 512>}, {transform_indices = @transform_2, window_bounds = array<i64: 128, 1>}, {transform_indices = @transform_3, window_bounds = array<i64: 1, 256>}, {transform_indices = @transform_4, window_bounds = array<i64: 128, 256>}]} {
    %c0_i32 = arith.constant 0 : i32
    %0 = arith.cmpi eq, %arg2, %c0_i32 : i32
    %1 = arith.extui %0 : i1 to i32
    %c0_i32_0 = arith.constant 0 : i32
    %2 = arith.cmpi ne, %1, %c0_i32_0 : i32
    scf.if %2 {
      %cst_9 = arith.constant 0.000000e+00 : f32
      %12 = vector.broadcast %cst_9 : f32 to vector<128x256xf32>
      %c0_10 = arith.constant 0 : index
      %c0_11 = arith.constant 0 : index
      %13 = vector.load %arg7[%c0_10, %c0_11] : memref<128x256xf32, #tpu.memory_space<vmem>>, vector<128x256xf32>
      tpu.vector_store %arg7[%c0_10, %c0_11], %12 {strides = array<i32>} : memref<128x256xf32, #tpu.memory_space<vmem>>, vector<128x256xf32>,
    } else {
    }
    %c0 = arith.constant 0 : index
    %c0_1 = arith.constant 0 : index
    %3 = vector.load %arg7[%c0, %c0_1] : memref<128x256xf32, #tpu.memory_space<vmem>>, vector<128x256xf32>
    %c0_2 = arith.constant 0 : index
    %c0_3 = arith.constant 0 : index
    %4 = vector.load %arg3[%c0_2, %c0_3] : memref<128x512xf32, #tpu.memory_space<vmem>>, vector<128x512xf32>
    %c0_4 = arith.constant 0 : index
    %c0_5 = arith.constant 0 : index
    %5 = vector.load %arg4[%c0_4, %c0_5] : memref<256x512xf32, #tpu.memory_space<vmem>>, vector<256x512xf32>
    %cst = arith.constant dense<0.000000e+00> : vector<128x256xf32>
    %6 = tpu.matmul %4, %5, %cst {dimension_numbers = #tpu.dot_dimension_numbers<[1], [1], [0], [0], [0, 0, 1, 0], [], []>} : vector<128x512xf32>, vector<256x512xf32>, vector<128x256xf32> -> vector<128x256xf32>
    %7 = arith.addf %3, %6 : vector<128x256xf32>
    %c0_6 = arith.constant 0 : index
    %c0_7 = arith.constant 0 : index
    %8 = vector.load %arg7[%c0_6, %c0_7] : memref<128x256xf32, #tpu.memory_space<vmem>>, vector<128x256xf32>
    tpu.vector_store %arg7[%c0_6, %c0_7], %7 {strides = array<i32>} : memref<128x256xf32, #tpu.memory_space<vmem>>, vector<128x256xf32>,
    %c1_i32 = arith.constant 1 : i32
    %9 = arith.cmpi eq, %arg2, %c1_i32 : i32
    %10 = arith.extui %9 : i1 to i32
    %c0_i32_8 = arith.constant 0 : i32
    %11 = arith.cmpi ne, %10, %c0_i32_8 : i32
    scf.if %11 {
      %c0_9 = arith.constant 0 : index
      %c0_10 = arith.constant 0 : index
      %12 = vector.load %arg7[%c0_9, %c0_10] : memref<128x256xf32, #tpu.memory_space<vmem>>, vector<128x256xf32>
      %c0_11 = arith.constant 0 : index
      %c0_12 = arith.constant 0 : index
      %13 = vector.load %arg5[%c0_11, %c0_12] : memref<128x1xf32, #tpu.memory_space<vmem>>, vector<128x1xf32>
      %c0_13 = arith.constant 0 : index
      %c0_14 = arith.constant 0 : index
      %14 = vector.load %arg6[%c0_13, %c0_14] : memref<1x256xf32, #tpu.memory_space<vmem>>, vector<1x256xf32>
      %15 = vector.broadcast %13 : vector<128x1xf32> to vector<128x256xf32>
      %16 = vector.broadcast %14 : vector<1x256xf32> to vector<128x256xf32>
      %17 = arith.mulf %15, %16 : vector<128x256xf32>
      %18 = arith.mulf %12, %17 : vector<128x256xf32>
      %c0_15 = arith.constant 0 : index
      %c0_16 = arith.constant 0 : index
      %19 = vector.load %arg7[%c0_15, %c0_16] : memref<128x256xf32, #tpu.memory_space<vmem>>, vector<128x256xf32>
      tpu.vector_store %arg7[%c0_15, %c0_16], %18 {strides = array<i32>} : memref<128x256xf32, #tpu.memory_space<vmem>>, vector<128x256xf32>,
    } else {
    }
    return
  }
  func.func @transform_0(%arg0: i32, %arg1: i32, %arg2: i32) -> (i32, i32) {
    %c0_i32 = arith.constant 0 : i32
    return %arg0, %arg2 : i32, i32
  }
  func.func @transform_1(%arg0: i32, %arg1: i32, %arg2: i32) -> (i32, i32) {
    %c0_i32 = arith.constant 0 : i32
    return %arg1, %arg2 : i32, i32
  }
  func.func @transform_2(%arg0: i32, %arg1: i32, %arg2: i32) -> (i32, i32) {
    %c0_i32 = arith.constant 0 : i32
    %c0_i32_0 = arith.constant 0 : i32
    return %arg0, %c0_i32 : i32, i32
  }
  func.func @transform_3(%arg0: i32, %arg1: i32, %arg2: i32) -> (i32, i32) {
    %c0_i32 = arith.constant 0 : i32
    %c0_i32_0 = arith.constant 0 : i32
    return %c0_i32, %arg1 : i32, i32
  }
  func.func @transform_4(%arg0: i32, %arg1: i32, %arg2: i32) -> (i32, i32) {
    %c0_i32 = arith.constant 0 : i32
    return %arg0, %arg1 : i32, i32
  }
}

</mosaic_0001>

<llo_original>
// kernel: tpu_custom_call.1
$region0: #{tpu_custom_call.1}
  #allocation0 [shape = 'u32[]', space=smem, size = 0x4, offset = 0x4, fixed_abs, tag = 'smem constant byte address 0x4 - core index']
  #allocation1 [shape = 'u32[144,128]{1,0:T(1,128)}', space=vmem, size = 0x12000, scoped, tag = 'internal scratch']
  %s0 = inlined_call_operand.hbm [shape: f32[256,1024], index: 0, kind: input, shape index: {}]
  %s1 = inlined_call_operand.hbm [shape: f32[256,1024], index: 1, kind: input, shape index: {}]
  %s2 = inlined_call_operand.vmem [shape: f32[256,1], index: 2, kind: input, shape index: {}]
  %s3 = inlined_call_operand.vmem [shape: f32[1,256], index: 3, kind: input, shape index: {}]
  %s4 = inlined_call_operand.hbm [shape: f32[256,256], index: 4, kind: output, shape index: {}]
  %s5 = sld [smem:[#allocation0]]
  $region65: #{tpu_custom_call.1} parent=0
    _
  %s7 = ssub.s32 1, %s5
  %s8 = scalar_select 0, %s7, %s5
  $region1: #{tpu_custom_call.1} parent=0
    #allocation2 [shape = 'u8[524288]{0}', space=vmem, size = 0x80000, scoped, tag = 'input window, operand 0']
    #allocation3 [shape = 's32[2]{0}', space=sflag, size = 0x8, scoped, tag = 'scoped memory for tpu_custom_call.1']
    #allocation4 [shape = 's32[2]{0}', space=sflag, size = 0x8, scoped, tag = 'scoped memory for tpu_custom_call.1']
    #allocation5 [shape = 'u8[1048576]{0}', space=vmem, size = 0x100000, scoped, tag = 'input window, operand 1']
    #allocation6 [shape = 's32[2]{0}', space=sflag, size = 0x8, scoped, tag = 'scoped memory for tpu_custom_call.1']
    #allocation7 [shape = 'u8[262144]{0}', space=vmem, size = 0x40000, scoped, tag = 'output window, operand 0']
    %9 = vsyncpa [#allocation3], 0
    %s10 = scalar_lea.sflag [#allocation3], 1
    %11 = vsyncpa %s10, 0
    %12 = vsyncpa [#allocation6], 0
    %s13 = scalar_lea.sflag [#allocation6], 1
    %14 = vsyncpa %s13, 0
    %15 = vsyncpa [#allocation4], 0
    %s16 = scalar_lea.sflag [#allocation4], 1
    %17 = vsyncpa %s16, 0
    loop: start=0, step=1, limit=6
    $region2: #{tpu_custom_call.1} parent=1 // loop_pre_header
      _
    $region3: #{tpu_custom_call.1} parent=1 // loop_header
      %s19 = sphi 0, %s23
      %p20 = scmp.ge.s32.totalorder %s19, 6
      %s26 = sphi 0, %s45
      %s27 = sphi 0, %s41
      %s28 = sphi 0, %s37
      %s29 = sphi 0, %s26
      %s30 = sphi 0, %s27
      %s31 = sphi 0, %s28
      %s32 = sphi 0, %s29
      %s33 = sphi 0, %s30
      %s34 = sphi 0, %s31
      %s50 = sphi 0, %s52
      %s53 = sphi 0, %s50
      %s54 = sphi 0, %s53
      %s70 = sphi 0, %s54
      %s78 = sphi 0, %s80
      %s81 = sphi 0, %s78
      %s82 = sphi 0, %s81
      %s98 = sphi 0, %s82
      %s104 = sphi 0, %s106
      %s107 = sphi 0, %s104
      %s108 = sphi 0, %s107
      %s124 = sphi 0, %s108
      %s130 = sphi 0, %s132
      %s133 = sphi 0, %s130
      %s134 = sphi 0, %s133
      %s150 = sphi 0, %s134
      %s158 = sphi 0, %s160
      %s161 = sphi 0, %s158
      %s162 = sphi 0, %s161
      %s178 = sphi 0, %s162
    $region4: #{tpu_custom_call.1} parent=1 // loop_header_branch
      %22 = sbr.rel (%p20) target = $region8
    $region5: #{tpu_custom_call.1} parent=1 // loop_body
      %s24 = ssub.s32 %s19, 1
      %s25 = ssub.s32 %s19, 2
      %s35 = sadd.s32 1, %s28
      %p36 = scmp.ge.s32.totalorder %s35, 2
      %s37 = scalar_select %p36, 0, %s35
      %s38 = sadd.s32 1, %s27
      %s39 = scalar_select %p36, %s38, %s27
      %p40 = scmp.ge.s32.totalorder %s39, 1
      %s41 = scalar_select %p40, 0, %s39
      %s42 = sadd.s32 1, %s26
      %s43 = scalar_select %p40, %s42, %s26
      %p44 = scmp.ge.s32.totalorder %s43, 2
      %s45 = scalar_select %p44, 0, %s43
      %s46 = ssub.s32 %s26, %s45
      %s47 = ssub.s32 %s28, %s37
      %s48 = sor.u32 %s46, %s47
      %p49 = scmp.eq.s32.totalorder %s48, 0
      %s51 = sadd.s32 %s50, 1
      %s52 = scalar_select %p49, %s50, %s51
      %p55 = pneg %p49
      %p56 = scmp.eq.s32.totalorder %s19, 3
      %p57 = por %p55, %p56
      %p58 = scmp.ne.s32.totalorder %s50, %s53
      %p59 = scmp.eq.s32.totalorder %s19, 0
      %p60 = por %p58, %p59
      %p61 = scmp.ne.s32.totalorder %s50, %s53
      %p62 = scmp.eq.s32.totalorder %s24, 3
      %p63 = por %p61, %p62
      %p64 = scmp.ne.s32.totalorder %s53, %s54
      %p65 = scmp.eq.s32.totalorder %s24, 0
      %p66 = por %p64, %p65
      %p67 = scmp.ne.s32.totalorder %s53, %s54
      %p68 = scmp.eq.s32.totalorder %s25, 3
      %p69 = por %p67, %p68
      %p71 = scmp.ne.s32.totalorder %s54, %s70
      %p72 = scmp.eq.s32.totalorder %s25, 0
      %p73 = por %p71, %p72
      %s74 = ssub.s32 %s27, %s41
      %s75 = ssub.s32 %s28, %s37
      %s76 = sor.u32 %s74, %s75
      %p77 = scmp.eq.s32.totalorder %s76, 0
      %s79 = sadd.s32 %s78, 1
      %s80 = scalar_select %p77, %s78, %s79
      %p83 = pneg %p77
      %p84 = scmp.eq.s32.totalorder %s19, 3
      %p85 = por %p83, %p84
      %p86 = scmp.ne.s32.totalorder %s78, %s81
      %p87 = scmp.eq.s32.totalorder %s19, 0
      %p88 = por %p86, %p87
      %p89 = scmp.ne.s32.totalorder %s78, %s81
      %p90 = scmp.eq.s32.totalorder %s24, 3
      %p91 = por %p89, %p90
      %p92 = scmp.ne.s32.totalorder %s81, %s82
      %p93 = scmp.eq.s32.totalorder %s24, 0
      %p94 = por %p92, %p93
      %p95 = scmp.ne.s32.totalorder %s81, %s82
      %p96 = scmp.eq.s32.totalorder %s25, 3
      %p97 = por %p95, %p96
      %p99 = scmp.ne.s32.totalorder %s82, %s98
      %p100 = scmp.eq.s32.totalorder %s25, 0
      %p101 = por %p99, %p100
      %s102 = ssub.s32 %s26, %s45
      %p103 = scmp.eq.s32.totalorder %s102, 0
      %s105 = sadd.s32 %s104, 1
      %s106 = scalar_select %p103, %s104, %s105
      %p109 = pneg %p103
      %p110 = scmp.eq.s32.totalorder %s19, 3
      %p111 = por %p109, %p110
      %p112 = scmp.ne.s32.totalorder %s104, %s107
      %p113 = scmp.eq.s32.totalorder %s19, 0
      %p114 = por %p112, %p113
      %p115 = scmp.ne.s32.totalorder %s104, %s107
      %p116 = scmp.eq.s32.totalorder %s24, 3
      %p117 = por %p115, %p116
      %p118 = scmp.ne.s32.totalorder %s107, %s108
      %p119 = scmp.eq.s32.totalorder %s24, 0
      %p120 = por %p118, %p119
      %p121 = scmp.ne.s32.totalorder %s107, %s108
      %p122 = scmp.eq.s32.totalorder %s25, 3
      %p123 = por %p121, %p122
      %p125 = scmp.ne.s32.totalorder %s108, %s124
      %p126 = scmp.eq.s32.totalorder %s25, 0
      %p127 = por %p125, %p126
      %s128 = ssub.s32 %s27, %s41
      %p129 = scmp.eq.s32.totalorder %s128, 0
      %s131 = sadd.s32 %s130, 1
      %s132 = scalar_select %p129, %s130, %s131
      %p135 = pneg %p129
      %p136 = scmp.eq.s32.totalorder %s19, 3
      %p137 = por %p135, %p136
      %p138 = scmp.ne.s32.totalorder %s130, %s133
      %p139 = scmp.eq.s32.totalorder %s19, 0
      %p140 = por %p138, %p139
      %p141 = scmp.ne.s32.totalorder %s130, %s133
      %p142 = scmp.eq.s32.totalorder %s24, 3
      %p143 = por %p141, %p142
      %p144 = scmp.ne.s32.totalorder %s133, %s134
      %p145 = scmp.eq.s32.totalorder %s24, 0
      %p146 = por %p144, %p145
      %p147 = scmp.ne.s32.totalorder %s133, %s134
      %p148 = scmp.eq.s32.totalorder %s25, 3
      %p149 = por %p147, %p148
      %p151 = scmp.ne.s32.totalorder %s134, %s150
      %p152 = scmp.eq.s32.totalorder %s25, 0
      %p153 = por %p151, %p152
      %s154 = ssub.s32 %s26, %s45
      %s155 = ssub.s32 %s27, %s41
      %s156 = sor.u32 %s154, %s155
      %p157 = scmp.eq.s32.totalorder %s156, 0
      %s159 = sadd.s32 %s158, 1
      %s160 = scalar_select %p157, %s158, %s159
      %p163 = pneg %p157
      %p164 = scmp.eq.s32.totalorder %s19, 3
      %p165 = por %p163, %p164
      %p166 = scmp.ne.s32.totalorder %s158, %s161
      %p167 = scmp.eq.s32.totalorder %s19, 0
      %p168 = por %p166, %p167
      %p169 = scmp.ne.s32.totalorder %s158, %s161
      %p170 = scmp.eq.s32.totalorder %s24, 3
      %p171 = por %p169, %p170
      %p172 = scmp.ne.s32.totalorder %s161, %s162
      %p173 = scmp.eq.s32.totalorder %s24, 0
      %p174 = por %p172, %p173
      %p175 = scmp.ne.s32.totalorder %s161, %s162
      %p176 = scmp.eq.s32.totalorder %s25, 3
      %p177 = por %p175, %p176
      %p179 = scmp.ne.s32.totalorder %s162, %s178
      %p180 = scmp.eq.s32.totalorder %s25, 0
      %p181 = por %p179, %p180
      %p182 = scmp.le.s32.totalorder 1, %s19
      %p183 = scmp.lt.s32.totalorder %s19, 5
      %p184 = pnand %p182, %p183
      %p185 = pneg %p184
      // Predicated region
      $region9: #{tpu_custom_call.1} parent=5 // pred_check
        _
      $region10: #{tpu_custom_call.1} parent=5 // pred_check_branch
        %187 = sbr.rel (%p184) target = $region12
      $region11: #{tpu_custom_call.1} parent=5 // pred_region
        %s188 = ssub.s32 %s19, 1
        // Predicated region
        $region13: #{tpu_custom_call.1} parent=11 // pred_check
          %p189 = pneg %p146
        $region14: #{tpu_custom_call.1} parent=11 // pred_check_branch
          %191 = sbr.rel (%p189) target = $region16
        $region15: #{tpu_custom_call.1} parent=11 // pred_region
          %s192 = smul.u32 2, %s30
          %p193 = scmp.lt.s32.totalorder %s192, 1
          %s194 = scalar_select %p193, %s192, 1
          %s195 = scalar_lea.vmem %s3, %s194
          %s196 = smul.u32 2, %s30
        $region16: #{tpu_custom_call.1} parent=11 // pred_fallthru
          _
      $region12: #{tpu_custom_call.1} parent=5 // pred_fallthru
        _
      %p197 = scmp.lt.s32.totalorder %s19, 4
      // Predicated region
      $region17: #{tpu_custom_call.1} parent=5 // pred_check
        %p198 = pneg %p197
      $region18: #{tpu_custom_call.1} parent=5 // pred_check_branch
        %200 = sbr.rel (%p198) target = $region20
      $region19: #{tpu_custom_call.1} parent=5 // pred_region
        // Predicated region
        $region21: #{tpu_custom_call.1} parent=19 // pred_check
          %p201 = pneg %p60
        $region22: #{tpu_custom_call.1} parent=19 // pred_check_branch
          %203 = sbr.rel (%p201) target = $region24
        $region23: #{tpu_custom_call.1} parent=19 // pred_region
          %s204 = sand.u32 %s50, 1
          %s205 = scalar_lea.sflag [#allocation3], %s204
          %s206 = sand.u32 %s50, 1
          %s207 = smul.addr %s206, 512
          %s208 = scalar_lea.vmem [#allocation2], %s207
          %s209 = smul.u32 16, %s26
          %s210 = smul.u32 4, %s28
          %s212 = ssub.s32 8192, 8192
          %213 = vsyncadd %s205, %s212
          %s214 = smul.addr %s209, 8
          %s215 = sadd.s32 %s210, %s214
          %s216 = smul.addr %s215, 128
          %s217 = scalar_lea.hbm %s0, %s216
          %s218 = sshll.u32 %s208, 4
          %s219 = int_to_ptr.vmem [resolvable:$true] %s218
          %224 = dma.hbm_to_vmem [thread:$0]  %s217, 8192, %s219, %s205, 1024, 512, 32
        $region24: #{tpu_custom_call.1} parent=19 // pred_fallthru
          _
        // Predicated region
        $region25: #{tpu_custom_call.1} parent=19 // pred_check
          %p225 = pneg %p88
        $region26: #{tpu_custom_call.1} parent=19 // pred_check_branch
          %227 = sbr.rel (%p225) target = $region28
        $region27: #{tpu_custom_call.1} parent=19 // pred_region
          %s228 = sand.u32 %s78, 1
          %s229 = scalar_lea.sflag [#allocation6], %s228
          %s230 = sand.u32 %s78, 1
          %s231 = smul.addr %s230, 1024
          %s232 = scalar_lea.vmem [#allocation5], %s231
          %s233 = smul.u32 32, %s27
          %s234 = smul.u32 4, %s28
          %s236 = ssub.s32 16384, 16384
          %237 = vsyncadd %s229, %s236
          %s238 = smul.addr %s233, 8
          %s239 = sadd.s32 %s234, %s238
          %s240 = smul.addr %s239, 128
          %s241 = scalar_lea.hbm %s1, %s240
          %s242 = sshll.u32 %s232, 4
          %s243 = int_to_ptr.vmem [resolvable:$true] %s242
          %248 = dma.hbm_to_vmem [thread:$0]  %s241, 16384, %s243, %s229, 1024, 512, 32
        $region28: #{tpu_custom_call.1} parent=19 // pred_fallthru
          _
        // Predicated region
        $region29: #{tpu_custom_call.1} parent=19 // pred_check
          %p249 = pneg %p114
        $region30: #{tpu_custom_call.1} parent=19 // pred_check_branch
          %251 = sbr.rel (%p249) target = $region32
        $region31: #{tpu_custom_call.1} parent=19 // pred_region
          %s252 = smul.u32 16, %s26
          %p253 = scmp.lt.s32.totalorder %s252, 31
          %s254 = scalar_select %p253, %s252, 31
          %s255 = smul.addr %s254, 8
          %s256 = scalar_lea.vmem %s2, %s255
          %s257 = smul.u32 16, %s26
        $region32: #{tpu_custom_call.1} parent=19 // pred_fallthru
          _
      $region20: #{tpu_custom_call.1} parent=5 // pred_fallthru
        _
      %p258 = scmp.le.s32.totalorder 1, %s19
      %p259 = scmp.lt.s32.totalorder %s19, 5
      %p260 = pnand %p258, %p259
      %p261 = pneg %p260
      // Predicated region
      $region33: #{tpu_custom_call.1} parent=5 // pred_check
        _
      $region34: #{tpu_custom_call.1} parent=5 // pred_check_branch
        %263 = sbr.rel (%p260) target = $region36
      $region35: #{tpu_custom_call.1} parent=5 // pred_region
        %s264 = ssub.s32 %s19, 1
        %s265 = sand.u32 %s53, 1
        %s266 = scalar_lea.sflag [#allocation3], %s265
        %s267 = sand.u32 %s53, 1
        %s268 = smul.addr %s267, 512
        %s269 = scalar_lea.vmem [#allocation2], %s268
        // Predicated region
        $region37: #{tpu_custom_call.1} parent=35 // pred_check
          %p270 = pneg %p66
        $region38: #{tpu_custom_call.1} parent=35 // pred_check_branch
          %272 = sbr.rel (%p270) target = $region40
        $region39: #{tpu_custom_call.1} parent=35 // pred_region
          %273 = dma.done %s266, 8192
        $region40: #{tpu_custom_call.1} parent=35 // pred_fallthru
          _
        %s274 = sand.u32 %s81, 1
        %s275 = scalar_lea.sflag [#allocation6], %s274
        %s276 = sand.u32 %s81, 1
        %s277 = smul.addr %s276, 1024
        %s278 = scalar_lea.vmem [#allocation5], %s277
        // Predicated region
        $region41: #{tpu_custom_call.1} parent=35 // pred_check
          %p279 = pneg %p94
        $region42: #{tpu_custom_call.1} parent=35 // pred_check_branch
          %281 = sbr.rel (%p279) target = $region44
        $region43: #{tpu_custom_call.1} parent=35 // pred_region
          %282 = dma.done %s275, 16384
        $region44: #{tpu_custom_call.1} parent=35 // pred_fallthru
          _
        %s283 = sand.u32 %s53, 1
        %s284 = scalar_lea.sflag [#allocation3], %s283
        %s285 = sand.u32 %s53, 1
        %s286 = smul.addr %s285, 512
        %s287 = scalar_lea.vmem [#allocation2], %s286
        %p288 = pneg %p66
        %p289 = pneg %p63
        %s290 = sand.u32 %s81, 1
        %s291 = scalar_lea.sflag [#allocation6], %s290
        %s292 = sand.u32 %s81, 1
        %s293 = smul.addr %s292, 1024
        %s294 = scalar_lea.vmem [#allocation5], %s293
        %p295 = pneg %p94
        %p296 = pneg %p91
        %s297 = smul.u32 16, %s29
        %p298 = scmp.lt.s32.totalorder %s297, 31
        %s299 = scalar_select %p298, %s297, 31
        %s300 = smul.addr %s299, 8
        %s301 = scalar_lea.vmem %s2, %s300
        %p302 = pneg %p120
        %p303 = pneg %p117
        %s304 = smul.u32 2, %s30
        %p305 = scmp.lt.s32.totalorder %s304, 1
        %s306 = scalar_select %p305, %s304, 1
        %s307 = scalar_lea.vmem %s3, %s306
        %p308 = pneg %p146
        %p309 = pneg %p143
        %p310 = pneg %p174
        %p311 = pneg %p171
        %s312 = sand.u32 %s161, 1
        %s313 = scalar_lea.sflag [#allocation4], %s312
        %s314 = sand.u32 %s161, 1
        %s315 = smul.addr %s314, 256
        %s316 = scalar_lea.vmem [#allocation7], %s315
        %s317 = smul.u32 16, %s29
        %s318 = smul.u32 4, %s31
        %s319 = smul.u32 32, %s30
        %s320 = smul.u32 4, %s31
        %s321 = smul.u32 16, %s29
        %p322 = scmp.lt.s32.totalorder %s321, 31
        %s323 = scalar_select %p322, %s321, 31
        %s324 = smul.addr %s323, 8
        %s325 = scalar_lea.vmem %s2, %s324
        %s326 = smul.u32 16, %s29
        %s327 = smul.u32 2, %s30
        %p328 = scmp.lt.s32.totalorder %s327, 1
        %s329 = scalar_select %p328, %s327, 1
        %s330 = scalar_lea.vmem %s3, %s329
        %s331 = smul.u32 2, %s30
        %s332 = smul.u32 16, %s29
        %s333 = smul.u32 2, %s30
        %p334 = scmp.eq.s32.totalorder %s31, 0
        // Predicated region
        $region45: #{tpu_custom_call.1} parent=35 // pred_check
          %p335 = pneg %p334
        $region46: #{tpu_custom_call.1} parent=35 // pred_check_branch
          %337 = sbr.rel (%p335) target = $region48
        $region47: #{tpu_custom_call.1} parent=35 // pred_region
          %338 = vst [vmem:[%s316] sm:$0xff] 0.0
          %339 = vst [vmem:[%s316 + $0x8] sm:$0xff] 0.0
          %340 = vst [vmem:[%s316 + $0x10] sm:$0xff] 0.0
          %341 = vst [vmem:[%s316 + $0x18] sm:$0xff] 0.0
          %342 = vst [vmem:[%s316 + $0x20] sm:$0xff] 0.0
          %343 = vst [vmem:[%s316 + $0x28] sm:$0xff] 0.0
          %344 = vst [vmem:[%s316 + $0x30] sm:$0xff] 0.0
          %345 = vst [vmem:[%s316 + $0x38] sm:$0xff] 0.0
          %346 = vst [vmem:[%s316 + $0x40] sm:$0xff] 0.0
          %347 = vst [vmem:[%s316 + $0x48] sm:$0xff] 0.0
          %348 = vst [vmem:[%s316 + $0x50] sm:$0xff] 0.0
          %349 = vst [vmem:[%s316 + $0x58] sm:$0xff] 0.0
          %350 = vst [vmem:[%s316 + $0x60] sm:$0xff] 0.0
          %351 = vst [vmem:[%s316 + $0x68] sm:$0xff] 0.0
          %352 = vst [vmem:[%s316 + $0x70] sm:$0xff] 0.0
          %353 = vst [vmem:[%s316 + $0x78] sm:$0xff] 0.0
          %354 = vst [vmem:[%s316 + $0x80] sm:$0xff] 0.0
          %355 = vst [vmem:[%s316 + $0x88] sm:$0xff] 0.0
          %356 = vst [vmem:[%s316 + $0x90] sm:$0xff] 0.0
          %357 = vst [vmem:[%s316 + $0x98] sm:$0xff] 0.0
          %358 = vst [vmem:[%s316 + $0xa0] sm:$0xff] 0.0
          %359 = vst [vmem:[%s316 + $0xa8] sm:$0xff] 0.0
          %360 = vst [vmem:[%s316 + $0xb0] sm:$0xff] 0.0
          %361 = vst [vmem:[%s316 + $0xb8] sm:$0xff] 0.0
          %362 = vst [vmem:[%s316 + $0xc0] sm:$0xff] 0.0
          %363 = vst [vmem:[%s316 + $0xc8] sm:$0xff] 0.0
          %364 = vst [vmem:[%s316 + $0xd0] sm:$0xff] 0.0
          %365 = vst [vmem:[%s316 + $0xd8] sm:$0xff] 0.0
          %366 = vst [vmem:[%s316 + $0xe0] sm:$0xff] 0.0
          %367 = vst [vmem:[%s316 + $0xe8] sm:$0xff] 0.0
          %368 = vst [vmem:[%s316 + $0xf0] sm:$0xff] 0.0
          %369 = vst [vmem:[%s316 + $0xf8] sm:$0xff] 0.0
        $region48: #{tpu_custom_call.1} parent=35 // pred_fallthru
          _
        %v370 = vld [vmem:[%s316] sm:$0xff]
        %v371 = vld [vmem:[%s316 + $0x8] sm:$0xff]
        %v372 = vld [vmem:[%s316 + $0x10] sm:$0xff]
        %v373 = vld [vmem:[%s316 + $0x18] sm:$0xff]
        %v374 = vld [vmem:[%s316 + $0x20] sm:$0xff]
        %v375 = vld [vmem:[%s316 + $0x28] sm:$0xff]
        %v376 = vld [vmem:[%s316 + $0x30] sm:$0xff]
        %v377 = vld [vmem:[%s316 + $0x38] sm:$0xff]
        %v378 = vld [vmem:[%s316 + $0x40] sm:$0xff]
        %v379 = vld [vmem:[%s316 + $0x48] sm:$0xff]
        %v380 = vld [vmem:[%s316 + $0x50] sm:$0xff]
        %v381 = vld [vmem:[%s316 + $0x58] sm:$0xff]
        %v382 = vld [vmem:[%s316 + $0x60] sm:$0xff]
        %v383 = vld [vmem:[%s316 + $0x68] sm:$0xff]
        %v384 = vld [vmem:[%s316 + $0x70] sm:$0xff]
        %v385 = vld [vmem:[%s316 + $0x78] sm:$0xff]
        %v386 = vld [vmem:[%s316 + $0x80] sm:$0xff]
        %v387 = vld [vmem:[%s316 + $0x88] sm:$0xff]
        %v388 = vld [vmem:[%s316 + $0x90] sm:$0xff]
        %v389 = vld [vmem:[%s316 + $0x98] sm:$0xff]
        %v390 = vld [vmem:[%s316 + $0xa0] sm:$0xff]
        %v391 = vld [vmem:[%s316 + $0xa8] sm:$0xff]
        %v392 = vld [vmem:[%s316 + $0xb0] sm:$0xff]
        %v393 = vld [vmem:[%s316 + $0xb8] sm:$0xff]
        %v394 = vld [vmem:[%s316 + $0xc0] sm:$0xff]
        %v395 = vld [vmem:[%s316 + $0xc8] sm:$0xff]
        %v396 = vld [vmem:[%s316 + $0xd0] sm:$0xff]
        %v397 = vld [vmem:[%s316 + $0xd8] sm:$0xff]
        %v398 = vld [vmem:[%s316 + $0xe0] sm:$0xff]
        %v399 = vld [vmem:[%s316 + $0xe8] sm:$0xff]
        %v400 = vld [vmem:[%s316 + $0xf0] sm:$0xff]
        %v401 = vld [vmem:[%s316 + $0xf8] sm:$0xff]
        %v402 = vld [vmem:[%s269] sm:$0xff]
        %v403 = vld [vmem:[%s269 + $0x8] sm:$0xff]
        %v404 = vld [vmem:[%s269 + $0x10] sm:$0xff]
        %v405 = vld [vmem:[%s269 + $0x18] sm:$0xff]
        %v406 = vld [vmem:[%s269 + $0x20] sm:$0xff]
        %v407 = vld [vmem:[%s269 + $0x28] sm:$0xff]
        %v408 = vld [vmem:[%s269 + $0x30] sm:$0xff]
        %v409 = vld [vmem:[%s269 + $0x38] sm:$0xff]
        %v410 = vld [vmem:[%s269 + $0x40] sm:$0xff]
        %v411 = vld [vmem:[%s269 + $0x48] sm:$0xff]
        %v412 = vld [vmem:[%s269 + $0x50] sm:$0xff]
        %v413 = vld [vmem:[%s269 + $0x58] sm:$0xff]
        %v414 = vld [vmem:[%s269 + $0x60] sm:$0xff]
        %v415 = vld [vmem:[%s269 + $0x68] sm:$0xff]
        %v416 = vld [vmem:[%s269 + $0x70] sm:$0xff]
        %v417 = vld [vmem:[%s269 + $0x78] sm:$0xff]
        %v418 = vld [vmem:[%s269 + $0x80] sm:$0xff]
        %v419 = vld [vmem:[%s269 + $0x88] sm:$0xff]
        %v420 = vld [vmem:[%s269 + $0x90] sm:$0xff]
        %v421 = vld [vmem:[%s269 + $0x98] sm:$0xff]
        %v422 = vld [vmem:[%s269 + $0xa0] sm:$0xff]
        %v423 = vld [vmem:[%s269 + $0xa8] sm:$0xff]
        %v424 = vld [vmem:[%s269 + $0xb0] sm:$0xff]
        %v425 = vld [vmem:[%s269 + $0xb8] sm:$0xff]
        %v426 = vld [vmem:[%s269 + $0xc0] sm:$0xff]
        %v427 = vld [vmem:[%s269 + $0xc8] sm:$0xff]
        %v428 = vld [vmem:[%s269 + $0xd0] sm:$0xff]
        %v429 = vld [vmem:[%s269 + $0xd8] sm:$0xff]
        %v430 = vld [vmem:[%s269 + $0xe0] sm:$0xff]
        %v431 = vld [vmem:[%s269 + $0xe8] sm:$0xff]
        %v432 = vld [vmem:[%s269 + $0xf0] sm:$0xff]
        %v433 = vld [vmem:[%s269 + $0xf8] sm:$0xff]
        %v434 = vld [vmem:[%s269 + $0x100] sm:$0xff]
        %v435 = vld [vmem:[%s269 + $0x108] sm:$0xff]
        %v436 = vld [vmem:[%s269 + $0x110] sm:$0xff]
        %v437 = vld [vmem:[%s269 + $0x118] sm:$0xff]
        %v438 = vld [vmem:[%s269 + $0x120] sm:$0xff]
        %v439 = vld [vmem:[%s269 + $0x128] sm:$0xff]
        %v440 = vld [vmem:[%s269 + $0x130] sm:$0xff]
        %v441 = vld [vmem:[%s269 + $0x138] sm:$0xff]
        %v442 = vld [vmem:[%s269 + $0x140] sm:$0xff]
        %v443 = vld [vmem:[%s269 + $0x148] sm:$0xff]
        %v444 = vld [vmem:[%s269 + $0x150] sm:$0xff]
        %v445 = vld [vmem:[%s269 + $0x158] sm:$0xff]
        %v446 = vld [vmem:[%s269 + $0x160] sm:$0xff]
        %v447 = vld [vmem:[%s269 + $0x168] sm:$0xff]
        %v448 = vld [vmem:[%s269 + $0x170] sm:$0xff]
        %v449 = vld [vmem:[%s269 + $0x178] sm:$0xff]
        %v450 = vld [vmem:[%s269 + $0x180] sm:$0xff]
        %v451 = vld [vmem:[%s269 + $0x188] sm:$0xff]
        %v452 = vld [vmem:[%s269 + $0x190] sm:$0xff]
        %v453 = vld [vmem:[%s269 + $0x198] sm:$0xff]
        %v454 = vld [vmem:[%s269 + $0x1a0] sm:$0xff]
        %v455 = vld [vmem:[%s269 + $0x1a8] sm:$0xff]
        %v456 = vld [vmem:[%s269 + $0x1b0] sm:$0xff]
        %v457 = vld [vmem:[%s269 + $0x1b8] sm:$0xff]
        %v458 = vld [vmem:[%s269 + $0x1c0] sm:$0xff]
        %v459 = vld [vmem:[%s269 + $0x1c8] sm:$0xff]
        %v460 = vld [vmem:[%s269 + $0x1d0] sm:$0xff]
        %v461 = vld [vmem:[%s269 + $0x1d8] sm:$0xff]
        %v462 = vld [vmem:[%s269 + $0x1e0] sm:$0xff]
        %v463 = vld [vmem:[%s269 + $0x1e8] sm:$0xff]
        %v464 = vld [vmem:[%s269 + $0x1f0] sm:$0xff]
        %v465 = vld [vmem:[%s269 + $0x1f8] sm:$0xff]
        %v466 = vld [vmem:[%s278] sm:$0xff]
        %v467 = vld [vmem:[%s278 + $0x8] sm:$0xff]
        %v468 = vld [vmem:[%s278 + $0x10] sm:$0xff]
        %v469 = vld [vmem:[%s278 + $0x18] sm:$0xff]
        %v470 = vld [vmem:[%s278 + $0x20] sm:$0xff]
        %v471 = vld [vmem:[%s278 + $0x28] sm:$0xff]
        %v472 = vld [vmem:[%s278 + $0x30] sm:$0xff]
        %v473 = vld [vmem:[%s278 + $0x38] sm:$0xff]
        %v474 = vld [vmem:[%s278 + $0x40] sm:$0xff]
        %v475 = vld [vmem:[%s278 + $0x48] sm:$0xff]
        %v476 = vld [vmem:[%s278 + $0x50] sm:$0xff]
        %v477 = vld [vmem:[%s278 + $0x58] sm:$0xff]
        %v478 = vld [vmem:[%s278 + $0x60] sm:$0xff]
        %v479 = vld [vmem:[%s278 + $0x68] sm:$0xff]
        %v480 = vld [vmem:[%s278 + $0x70] sm:$0xff]
        %v481 = vld [vmem:[%s278 + $0x78] sm:$0xff]
        %v482 = vld [vmem:[%s278 + $0x80] sm:$0xff]
        %v483 = vld [vmem:[%s278 + $0x88] sm:$0xff]
        %v484 = vld [vmem:[%s278 + $0x90] sm:$0xff]
        %v485 = vld [vmem:[%s278 + $0x98] sm:$0xff]
        %v486 = vld [vmem:[%s278 + $0xa0] sm:$0xff]
        %v487 = vld [vmem:[%s278 + $0xa8] sm:$0xff]
        %v488 = vld [vmem:[%s278 + $0xb0] sm:$0xff]
        %v489 = vld [vmem:[%s278 + $0xb8] sm:$0xff]
        %v490 = vld [vmem:[%s278 + $0xc0] sm:$0xff]
        %v491 = vld [vmem:[%s278 + $0xc8] sm:$0xff]
        %v492 = vld [vmem:[%s278 + $0xd0] sm:$0xff]
        %v493 = vld [vmem:[%s278 + $0xd8] sm:$0xff]
        %v494 = vld [vmem:[%s278 + $0xe0] sm:$0xff]
        %v495 = vld [vmem:[%s278 + $0xe8] sm:$0xff]
        %v496 = vld [vmem:[%s278 + $0xf0] sm:$0xff]
        %v497 = vld [vmem:[%s278 + $0xf8] sm:$0xff]
        %v498 = vld [vmem:[%s278 + $0x100] sm:$0xff]
        %v499 = vld [vmem:[%s278 + $0x108] sm:$0xff]
        %v500 = vld [vmem:[%s278 + $0x110] sm:$0xff]
        %v501 = vld [vmem:[%s278 + $0x118] sm:$0xff]
        %v502 = vld [vmem:[%s278 + $0x120] sm:$0xff]
        %v503 = vld [vmem:[%s278 + $0x128] sm:$0xff]
        %v504 = vld [vmem:[%s278 + $0x130] sm:$0xff]
        %v505 = vld [vmem:[%s278 + $0x138] sm:$0xff]
        %v506 = vld [vmem:[%s278 + $0x140] sm:$0xff]
        %v507 = vld [vmem:[%s278 + $0x148] sm:$0xff]
        %v508 = vld [vmem:[%s278 + $0x150] sm:$0xff]
        %v509 = vld [vmem:[%s278 + $0x158] sm:$0xff]
        %v510 = vld [vmem:[%s278 + $0x160] sm:$0xff]
        %v511 = vld [vmem:[%s278 + $0x168] sm:$0xff]
        %v512 = vld [vmem:[%s278 + $0x170] sm:$0xff]
        %v513 = vld [vmem:[%s278 + $0x178] sm:$0xff]
        %v514 = vld [vmem:[%s278 + $0x180] sm:$0xff]
        %v515 = vld [vmem:[%s278 + $0x188] sm:$0xff]
        %v516 = vld [vmem:[%s278 + $0x190] sm:$0xff]
        %v517 = vld [vmem:[%s278 + $0x198] sm:$0xff]
        %v518 = vld [vmem:[%s278 + $0x1a0] sm:$0xff]
        %v519 = vld [vmem:[%s278 + $0x1a8] sm:$0xff]
        %v520 = vld [vmem:[%s278 + $0x1b0] sm:$0xff]
        %v521 = vld [vmem:[%s278 + $0x1b8] sm:$0xff]
        %v522 = vld [vmem:[%s278 + $0x1c0] sm:$0xff]
        %v523 = vld [vmem:[%s278 + $0x1c8] sm:$0xff]
        %v524 = vld [vmem:[%s278 + $0x1d0] sm:$0xff]
        %v525 = vld [vmem:[%s278 + $0x1d8] sm:$0xff]
        %v526 = vld [vmem:[%s278 + $0x1e0] sm:$0xff]
        %v527 = vld [vmem:[%s278 + $0x1e8] sm:$0xff]
        %v528 = vld [vmem:[%s278 + $0x1f0] sm:$0xff]
        %v529 = vld [vmem:[%s278 + $0x1f8] sm:$0xff]
        %v530 = vld [vmem:[%s278 + $0x200] sm:$0xff]
        %v531 = vld [vmem:[%s278 + $0x208] sm:$0xff]
        %v532 = vld [vmem:[%s278 + $0x210] sm:$0xff]
        %v533 = vld [vmem:[%s278 + $0x218] sm:$0xff]
        %v534 = vld [vmem:[%s278 + $0x220] sm:$0xff]
        %v535 = vld [vmem:[%s278 + $0x228] sm:$0xff]
        %v536 = vld [vmem:[%s278 + $0x230] sm:$0xff]
        %v537 = vld [vmem:[%s278 + $0x238] sm:$0xff]
        %v538 = vld [vmem:[%s278 + $0x240] sm:$0xff]
        %v539 = vld [vmem:[%s278 + $0x248] sm:$0xff]
        %v540 = vld [vmem:[%s278 + $0x250] sm:$0xff]
        %v541 = vld [vmem:[%s278 + $0x258] sm:$0xff]
        %v542 = vld [vmem:[%s278 + $0x260] sm:$0xff]
        %v543 = vld [vmem:[%s278 + $0x268] sm:$0xff]
        %v544 = vld [vmem:[%s278 + $0x270] sm:$0xff]
        %v545 = vld [vmem:[%s278 + $0x278] sm:$0xff]
        %v546 = vld [vmem:[%s278 + $0x280] sm:$0xff]
        %v547 = vld [vmem:[%s278 + $0x288] sm:$0xff]
        %v548 = vld [vmem:[%s278 + $0x290] sm:$0xff]
        %v549 = vld [vmem:[%s278 + $0x298] sm:$0xff]
        %v550 = vld [vmem:[%s278 + $0x2a0] sm:$0xff]
        %v551 = vld [vmem:[%s278 + $0x2a8] sm:$0xff]
        %v552 = vld [vmem:[%s278 + $0x2b0] sm:$0xff]
        %v553 = vld [vmem:[%s278 + $0x2b8] sm:$0xff]
        %v554 = vld [vmem:[%s278 + $0x2c0] sm:$0xff]
        %v555 = vld [vmem:[%s278 + $0x2c8] sm:$0xff]
        %v556 = vld [vmem:[%s278 + $0x2d0] sm:$0xff]
        %v557 = vld [vmem:[%s278 + $0x2d8] sm:$0xff]
        %v558 = vld [vmem:[%s278 + $0x2e0] sm:$0xff]
        %v559 = vld [vmem:[%s278 + $0x2e8] sm:$0xff]
        %v560 = vld [vmem:[%s278 + $0x2f0] sm:$0xff]
        %v561 = vld [vmem:[%s278 + $0x2f8] sm:$0xff]
        %v562 = vld [vmem:[%s278 + $0x300] sm:$0xff]
        %v563 = vld [vmem:[%s278 + $0x308] sm:$0xff]
        %v564 = vld [vmem:[%s278 + $0x310] sm:$0xff]
        %v565 = vld [vmem:[%s278 + $0x318] sm:$0xff]
        %v566 = vld [vmem:[%s278 + $0x320] sm:$0xff]
        %v567 = vld [vmem:[%s278 + $0x328] sm:$0xff]
        %v568 = vld [vmem:[%s278 + $0x330] sm:$0xff]
        %v569 = vld [vmem:[%s278 + $0x338] sm:$0xff]
        %v570 = vld [vmem:[%s278 + $0x340] sm:$0xff]
        %v571 = vld [vmem:[%s278 + $0x348] sm:$0xff]
        %v572 = vld [vmem:[%s278 + $0x350] sm:$0xff]
        %v573 = vld [vmem:[%s278 + $0x358] sm:$0xff]
        %v574 = vld [vmem:[%s278 + $0x360] sm:$0xff]
        %v575 = vld [vmem:[%s278 + $0x368] sm:$0xff]
        %v576 = vld [vmem:[%s278 + $0x370] sm:$0xff]
        %v577 = vld [vmem:[%s278 + $0x378] sm:$0xff]
        %v578 = vld [vmem:[%s278 + $0x380] sm:$0xff]
        %v579 = vld [vmem:[%s278 + $0x388] sm:$0xff]
        %v580 = vld [vmem:[%s278 + $0x390] sm:$0xff]
        %v581 = vld [vmem:[%s278 + $0x398] sm:$0xff]
        %v582 = vld [vmem:[%s278 + $0x3a0] sm:$0xff]
        %v583 = vld [vmem:[%s278 + $0x3a8] sm:$0xff]
        %v584 = vld [vmem:[%s278 + $0x3b0] sm:$0xff]
        %v585 = vld [vmem:[%s278 + $0x3b8] sm:$0xff]
        %v586 = vld [vmem:[%s278 + $0x3c0] sm:$0xff]
        %v587 = vld [vmem:[%s278 + $0x3c8] sm:$0xff]
        %v588 = vld [vmem:[%s278 + $0x3d0] sm:$0xff]
        %v589 = vld [vmem:[%s278 + $0x3d8] sm:$0xff]
        %v590 = vld [vmem:[%s278 + $0x3e0] sm:$0xff]
        %v591 = vld [vmem:[%s278 + $0x3e8] sm:$0xff]
        %v592 = vld [vmem:[%s278 + $0x3f0] sm:$0xff]
        %v593 = vld [vmem:[%s278 + $0x3f8] sm:$0xff]
        %594 = vmatprep.subr.mxu0 %v467
        %595 = vmatpush1.xpose.msra.mxu0 %v466
        %596 = vmatprep.subr.mxu0 %v471
        %597 = vmatpush1.xpose.msra.mxu0 %v470
        %598 = vmatprep.subr.mxu0 %v475
        %599 = vmatpush1.xpose.msra.mxu0 %v474
        %600 = vmatprep.subr.mxu0 %v479
        %601 = vmatpush1.xpose.msra.mxu0 %v478
        %602 = vmatprep.subr.mxu0 %v483
        %603 = vmatpush1.xpose.msra.mxu0 %v482
        %604 = vmatprep.subr.mxu0 %v487
        %605 = vmatpush1.xpose.msra.mxu0 %v486
        %606 = vmatprep.subr.mxu0 %v491
        %607 = vmatpush1.xpose.msra.mxu0 %v490
        %608 = vmatprep.subr.mxu0 %v495
        %609 = vmatpush1.xpose.msra.mxu0 %v494
        %610 = vmatprep.subr.mxu0 %v499
        %611 = vmatpush1.xpose.msra.mxu0 %v498
        %612 = vmatprep.subr.mxu0 %v503
        %613 = vmatpush1.xpose.msra.mxu0 %v502
        %614 = vmatprep.subr.mxu0 %v507
        %615 = vmatpush1.xpose.msra.mxu0 %v506
        %616 = vmatprep.subr.mxu0 %v511
        %617 = vmatpush1.xpose.msra.mxu0 %v510
        %618 = vmatprep.subr.mxu0 %v515
        %619 = vmatpush1.xpose.msra.mxu0 %v514
        %620 = vmatprep.subr.mxu0 %v519
        %621 = vmatpush1.xpose.msra.mxu0 %v518
        %622 = vmatprep.subr.mxu0 %v523
        %623 = vmatpush1.xpose.msra.mxu0 %v522
        %624 = vmatprep.subr.mxu0 %v527
        %625 = vmatpush1.xpose.msra.mxu0 %v526
        %626 = vmatprep.subr.mxu0 %v531
        %627 = vmatpush1.xpose.msra.mxu0 %v530
        %628 = vmatprep.subr.mxu0 %v535
        %629 = vmatpush1.xpose.msra.mxu0 %v534
        %630 = vmatprep.subr.mxu0 %v539
        %631 = vmatpush1.xpose.msra.mxu0 %v538
        %632 = vmatprep.subr.mxu0 %v543
        %633 = vmatpush1.xpose.msra.mxu0 %v542
        %634 = vmatprep.subr.mxu0 %v547
        %635 = vmatpush1.xpose.msra.mxu0 %v546
        %636 = vmatprep.subr.mxu0 %v551
        %637 = vmatpush1.xpose.msra.mxu0 %v550
        %638 = vmatprep.subr.mxu0 %v555
        %639 = vmatpush1.xpose.msra.mxu0 %v554
        %640 = vmatprep.subr.mxu0 %v559
        %641 = vmatpush1.xpose.msra.mxu0 %v558
        %642 = vmatprep.subr.mxu0 %v563
        %643 = vmatpush1.xpose.msra.mxu0 %v562
        %644 = vmatprep.subr.mxu0 %v567
        %645 = vmatpush1.xpose.msra.mxu0 %v566
        %646 = vmatprep.subr.mxu0 %v571
        %647 = vmatpush1.xpose.msra.mxu0 %v570
        %648 = vmatprep.subr.mxu0 %v575
        %649 = vmatpush1.xpose.msra.mxu0 %v574
        %650 = vmatprep.subr.mxu0 %v579
        %651 = vmatpush1.xpose.msra.mxu0 %v578
        %652 = vmatprep.subr.mxu0 %v583
        %653 = vmatpush1.xpose.msra.mxu0 %v582
        %654 = vmatprep.subr.mxu0 %v587
        %655 = vmatpush1.xpose.msra.mxu0 %v586
        %656 = vmatprep.subr.mxu0 %v591
        %657 = vmatpush1.xpose.msra.mxu0 %v590
        %658 = vmatprep.mubr.f32.mxu0 %v403
        %659 = vmatmul.mubr.f32.gmra.mrb[0].mxu0 %v402
        %v660 = vpop.f32.mrb[0].mxu0
        %v661 = vadd.f32 0.0, %v660
        %v662 = vpop.f32.mrb[0].mxu0
        %v663 = vadd.f32 0.0, %v662
        %664 = vmatprep.mubr.f32.mxu0 %v407
        %665 = vmatmul.mubr.f32.gmra.mrb[0].mxu0 %v406
        %v666 = vpop.f32.mrb[0].mxu0
        %v667 = vadd.f32 0.0, %v666
        %v668 = vpop.f32.mrb[0].mxu0
        %v669 = vadd.f32 0.0, %v668
        %670 = vmatprep.mubr.f32.mxu0 %v411
        %671 = vmatmul.mubr.f32.gmra.mrb[0].mxu0 %v410
        %v672 = vpop.f32.mrb[0].mxu0
        %v673 = vadd.f32 0.0, %v672
        %v674 = vpop.f32.mrb[0].mxu0
        %v675 = vadd.f32 0.0, %v674
        %676 = vmatprep.mubr.f32.mxu0 %v415
        %677 = vmatmul.mubr.f32.gmra.mrb[0].mxu0 %v414
        %v678 = vpop.f32.mrb[0].mxu0
        %v679 = vadd.f32 0.0, %v678
        %v680 = vpop.f32.mrb[0].mxu0
        %v681 = vadd.f32 0.0, %v680
        %682 = vmatprep.mubr.f32.mxu0 %v419
        %683 = vmatmul.mubr.f32.gmra.mrb[0].mxu0 %v418
        %v684 = vpop.f32.mrb[0].mxu0
        %v685 = vadd.f32 0.0, %v684
        %v686 = vpop.f32.mrb[0].mxu0
        %v687 = vadd.f32 0.0, %v686
        %688 = vmatprep.mubr.f32.mxu0 %v423
        %689 = vmatmul.mubr.f32.gmra.mrb[0].mxu0 %v422
        %v690 = vpop.f32.mrb[0].mxu0
        %v691 = vadd.f32 0.0, %v690
        %v692 = vpop.f32.mrb[0].mxu0
        %v693 = vadd.f32 0.0, %v692
        %694 = vmatprep.mubr.f32.mxu0 %v427
        %695 = vmatmul.mubr.f32.gmra.mrb[0].mxu0 %v426
        %v696 = vpop.f32.mrb[0].mxu0
        %v697 = vadd.f32 0.0, %v696
        %v698 = vpop.f32.mrb[0].mxu0
        %v699 = vadd.f32 0.0, %v698
        %700 = vmatprep.mubr.f32.mxu0 %v431
        %701 = vmatmul.mubr.f32.gmra.mrb[0].mxu0 %v430
        %v702 = vpop.f32.mrb[0].mxu0
        %v703 = vadd.f32 0.0, %v702
        %v704 = vpop.f32.mrb[0].mxu0
        %v705 = vadd.f32 0.0, %v704
        %706 = vmatprep.mubr.f32.mxu0 %v435
        %707 = vmatmul.mubr.f32.gmra.mrb[0].mxu0 %v434
        %v708 = vpop.f32.mrb[0].mxu0
        %v709 = vadd.f32 0.0, %v708
        %v710 = vpop.f32.mrb[0].mxu0
        %v711 = vadd.f32 0.0, %v710
        %712 = vmatprep.mubr.f32.mxu0 %v439
        %713 = vmatmul.mubr.f32.gmra.mrb[0].mxu0 %v438
        %v714 = vpop.f32.mrb[0].mxu0
        %v715 = vadd.f32 0.0, %v714
        %v716 = vpop.f32.mrb[0].mxu0
        %v717 = vadd.f32 0.0, %v716
        %718 = vmatprep.mubr.f32.mxu0 %v443
        %719 = vmatmul.mubr.f32.gmra.mrb[0].mxu0 %v442
        %v720 = vpop.f32.mrb[0].mxu0
        %v721 = vadd.f32 0.0, %v720
        %v722 = vpop.f32.mrb[0].mxu0
        %v723 = vadd.f32 0.0, %v722
        %724 = vmatprep.mubr.f32.mxu0 %v447
        %725 = vmatmul.mubr.f32.gmra.mrb[0].mxu0 %v446
        %v726 = vpop.f32.mrb[0].mxu0
        %v727 = vadd.f32 0.0, %v726
        %v728 = vpop.f32.mrb[0].mxu0
        %v729 = vadd.f32 0.0, %v728
        %730 = vmatprep.mubr.f32.mxu0 %v451
        %731 = vmatmul.mubr.f32.gmra.mrb[0].mxu0 %v450
        %v732 = vpop.f32.mrb[0].mxu0
        %v733 = vadd.f32 0.0, %v732
        %v734 = vpop.f32.mrb[0].mxu0
        %v735 = vadd.f32 0.0, %v734
        %736 = vmatprep.mubr.f32.mxu0 %v455
        %737 = vmatmul.mubr.f32.gmra.mrb[0].mxu0 %v454
        %v738 = vpop.f32.mrb[0].mxu0
        %v739 = vadd.f32 0.0, %v738
        %v740 = vpop.f32.mrb[0].mxu0
        %v741 = vadd.f32 0.0, %v740
        %742 = vmatprep.mubr.f32.mxu0 %v459
        %743 = vmatmul.mubr.f32.gmra.mrb[0].mxu0 %v458
        %v744 = vpop.f32.mrb[0].mxu0
        %v745 = vadd.f32 0.0, %v744
        %v746 = vpop.f32.mrb[0].mxu0
        %v747 = vadd.f32 0.0, %v746
        %748 = vmatprep.mubr.f32.mxu0 %v463
        %749 = vmatmul.mubr.f32.gmra.mrb[0].mxu0 %v462
        %v750 = vpop.f32.mrb[0].mxu0
        %v751 = vadd.f32 0.0, %v750
        %v752 = vpop.f32.mrb[0].mxu0
        %v753 = vadd.f32 0.0, %v752
        %754 = vdwg.mxu0
        %755 = vmatprep.subr.mxu0 %v469
        %756 = vmatpush1.xpose.msra.mxu0 %v468
        %757 = vmatprep.subr.mxu0 %v473
        %758 = vmatpush1.xpose.msra.mxu0 %v472
        %759 = vmatprep.subr.mxu0 %v477
        %760 = vmatpush1.xpose.msra.mxu0 %v476
        %761 = vmatprep.subr.mxu0 %v481
        %762 = vmatpush1.xpose.msra.mxu0 %v480
        %763 = vmatprep.subr.mxu0 %v485
        %764 = vmatpush1.xpose.msra.mxu0 %v484
        %765 = vmatprep.subr.mxu0 %v489
        %766 = vmatpush1.xpose.msra.mxu0 %v488
        %767 = vmatprep.subr.mxu0 %v493
        %768 = vmatpush1.xpose.msra.mxu0 %v492
        %769 = vmatprep.subr.mxu0 %v497
        %770 = vmatpush1.xpose.msra.mxu0 %v496
        %771 = vmatprep.subr.mxu0 %v501
        %772 = vmatpush1.xpose.msra.mxu0 %v500
        %773 = vmatprep.subr.mxu0 %v505
        %774 = vmatpush1.xpose.msra.mxu0 %v504
        %775 = vmatprep.subr.mxu0 %v509
        %776 = vmatpush1.xpose.msra.mxu0 %v508
        %777 = vmatprep.subr.mxu0 %v513
        %778 = vmatpush1.xpose.msra.mxu0 %v512
        %779 = vmatprep.subr.mxu0 %v517
        %780 = vmatpush1.xpose.msra.mxu0 %v516
        %781 = vmatprep.subr.mxu0 %v521
        %782 = vmatpush1.xpose.msra.mxu0 %v520
        %783 = vmatprep.subr.mxu0 %v525
        %784 = vmatpush1.xpose.msra.mxu0 %v524
        %785 = vmatprep.subr.mxu0 %v529
        %786 = vmatpush1.xpose.msra.mxu0 %v528
        %787 = vmatprep.subr.mxu0 %v533
        %788 = vmatpush1.xpose.msra.mxu0 %v532
        %789 = vmatprep.subr.mxu0 %v537
        %790 = vmatpush1.xpose.msra.mxu0 %v536
        %791 = vmatprep.subr.mxu0 %v541
        %792 = vmatpush1.xpose.msra.mxu0 %v540
        %793 = vmatprep.subr.mxu0 %v545
        %794 = vmatpush1.xpose.msra.mxu0 %v544
        %795 = vmatprep.subr.mxu0 %v549
        %796 = vmatpush1.xpose.msra.mxu0 %v548
        %797 = vmatprep.subr.mxu0 %v553
        %798 = vmatpush1.xpose.msra.mxu0 %v552
        %799 = vmatprep.subr.mxu0 %v557
        %800 = vmatpush1.xpose.msra.mxu0 %v556
        %801 = vmatprep.subr.mxu0 %v561
        %802 = vmatpush1.xpose.msra.mxu0 %v560
        %803 = vmatprep.subr.mxu0 %v565
        %804 = vmatpush1.xpose.msra.mxu0 %v564
        %805 = vmatprep.subr.mxu0 %v569
        %806 = vmatpush1.xpose.msra.mxu0 %v568
        %807 = vmatprep.subr.mxu0 %v573
        %808 = vmatpush1.xpose.msra.mxu0 %v572
        %809 = vmatprep.subr.mxu0 %v577
        %810 = vmatpush1.xpose.msra.mxu0 %v576
        %811 = vmatprep.subr.mxu0 %v581
        %812 = vmatpush1.xpose.msra.mxu0 %v580
        %813 = vmatprep.subr.mxu0 %v585
        %814 = vmatpush1.xpose.msra.mxu0 %v584
        %815 = vmatprep.subr.mxu0 %v589
        %816 = vmatpush1.xpose.msra.mxu0 %v588
        %817 = vmatprep.subr.mxu0 %v593
        %818 = vmatpush1.xpose.msra.mxu0 %v592
        %819 = vmatprep.mubr.f32.mxu0 %v405
        %820 = vmatmul.mubr.f32.gmra.mrb[0].mxu0 %v404
        %v821 = vpop.f32.mrb[0].mxu0
        %v822 = vadd.f32 %v661, %v821
        %v823 = vpop.f32.mrb[0].mxu0
        %v824 = vadd.f32 %v663, %v823
        %825 = vmatprep.mubr.f32.mxu0 %v409
        %826 = vmatmul.mubr.f32.gmra.mrb[0].mxu0 %v408
        %v827 = vpop.f32.mrb[0].mxu0
        %v828 = vadd.f32 %v667, %v827
        %v829 = vpop.f32.mrb[0].mxu0
        %v830 = vadd.f32 %v669, %v829
        %831 = vmatprep.mubr.f32.mxu0 %v413
        %832 = vmatmul.mubr.f32.gmra.mrb[0].mxu0 %v412
        %v833 = vpop.f32.mrb[0].mxu0
        %v834 = vadd.f32 %v673, %v833
        %v835 = vpop.f32.mrb[0].mxu0
        %v836 = vadd.f32 %v675, %v835
        %837 = vmatprep.mubr.f32.mxu0 %v417
        %838 = vmatmul.mubr.f32.gmra.mrb[0].mxu0 %v416
        %v839 = vpop.f32.mrb[0].mxu0
        %v840 = vadd.f32 %v679, %v839
        %v841 = vpop.f32.mrb[0].mxu0
        %v842 = vadd.f32 %v681, %v841
        %843 = vmatprep.mubr.f32.mxu0 %v421
        %844 = vmatmul.mubr.f32.gmra.mrb[0].mxu0 %v420
        %v845 = vpop.f32.mrb[0].mxu0
        %v846 = vadd.f32 %v685, %v845
        %v847 = vpop.f32.mrb[0].mxu0
        %v848 = vadd.f32 %v687, %v847
        %849 = vmatprep.mubr.f32.mxu0 %v425
        %850 = vmatmul.mubr.f32.gmra.mrb[0].mxu0 %v424
        %v851 = vpop.f32.mrb[0].mxu0
        %v852 = vadd.f32 %v691, %v851
        %v853 = vpop.f32.mrb[0].mxu0
        %v854 = vadd.f32 %v693, %v853
        %855 = vmatprep.mubr.f32.mxu0 %v429
        %856 = vmatmul.mubr.f32.gmra.mrb[0].mxu0 %v428
        %v857 = vpop.f32.mrb[0].mxu0
        %v858 = vadd.f32 %v697, %v857
        %v859 = vpop.f32.mrb[0].mxu0
        %v860 = vadd.f32 %v699, %v859
        %861 = vmatprep.mubr.f32.mxu0 %v433
        %862 = vmatmul.mubr.f32.gmra.mrb[0].mxu0 %v432
        %v863 = vpop.f32.mrb[0].mxu0
        %v864 = vadd.f32 %v703, %v863
        %v865 = vpop.f32.mrb[0].mxu0
        %v866 = vadd.f32 %v705, %v865
        %867 = vmatprep.mubr.f32.mxu0 %v437
        %868 = vmatmul.mubr.f32.gmra.mrb[0].mxu0 %v436
        %v869 = vpop.f32.mrb[0].mxu0
        %v870 = vadd.f32 %v709, %v869
        %v871 = vpop.f32.mrb[0].mxu0
        %v872 = vadd.f32 %v711, %v871
        %873 = vmatprep.mubr.f32.mxu0 %v441
        %874 = vmatmul.mubr.f32.gmra.mrb[0].mxu0 %v440
        %v875 = vpop.f32.mrb[0].mxu0
        %v876 = vadd.f32 %v715, %v875
        %v877 = vpop.f32.mrb[0].mxu0
        %v878 = vadd.f32 %v717, %v877
        %879 = vmatprep.mubr.f32.mxu0 %v445
        %880 = vmatmul.mubr.f32.gmra.mrb[0].mxu0 %v444
        %v881 = vpop.f32.mrb[0].mxu0
        %v882 = vadd.f32 %v721, %v881
        %v883 = vpop.f32.mrb[0].mxu0
        %v884 = vadd.f32 %v723, %v883
        %885 = vmatprep.mubr.f32.mxu0 %v449
        %886 = vmatmul.mubr.f32.gmra.mrb[0].mxu0 %v448
        %v887 = vpop.f32.mrb[0].mxu0
        %v888 = vadd.f32 %v727, %v887
        %v889 = vpop.f32.mrb[0].mxu0
        %v890 = vadd.f32 %v729, %v889
        %891 = vmatprep.mubr.f32.mxu0 %v453
        %892 = vmatmul.mubr.f32.gmra.mrb[0].mxu0 %v452
        %v893 = vpop.f32.mrb[0].mxu0
        %v894 = vadd.f32 %v733, %v893
        %v895 = vpop.f32.mrb[0].mxu0
        %v896 = vadd.f32 %v735, %v895
        %897 = vmatprep.mubr.f32.mxu0 %v457
        %898 = vmatmul.mubr.f32.gmra.mrb[0].mxu0 %v456
        %v899 = vpop.f32.mrb[0].mxu0
        %v900 = vadd.f32 %v739, %v899
        %v901 = vpop.f32.mrb[0].mxu0
        %v902 = vadd.f32 %v741, %v901
        %903 = vmatprep.mubr.f32.mxu0 %v461
        %904 = vmatmul.mubr.f32.gmra.mrb[0].mxu0 %v460
        %v905 = vpop.f32.mrb[0].mxu0
        %v906 = vadd.f32 %v745, %v905
        %v907 = vpop.f32.mrb[0].mxu0
        %v908 = vadd.f32 %v747, %v907
        %909 = vmatprep.mubr.f32.mxu0 %v465
        %910 = vmatmul.mubr.f32.gmra.mrb[0].mxu0 %v464
        %v911 = vpop.f32.mrb[0].mxu0
        %v912 = vadd.f32 %v751, %v911
        %v913 = vpop.f32.mrb[0].mxu0
        %v914 = vadd.f32 %v753, %v913
        %915 = vdwg.mxu0
        %v916 = vadd.f32 %v370, %v822
        %v917 = vadd.f32 %v371, %v824
        %v918 = vadd.f32 %v372, %v828
        %v919 = vadd.f32 %v373, %v830
        %v920 = vadd.f32 %v374, %v834
        %v921 = vadd.f32 %v375, %v836
        %v922 = vadd.f32 %v376, %v840
        %v923 = vadd.f32 %v377, %v842
        %v924 = vadd.f32 %v378, %v846
        %v925 = vadd.f32 %v379, %v848
        %v926 = vadd.f32 %v380, %v852
        %v927 = vadd.f32 %v381, %v854
        %v928 = vadd.f32 %v382, %v858
        %v929 = vadd.f32 %v383, %v860
        %v930 = vadd.f32 %v384, %v864
        %v931 = vadd.f32 %v385, %v866
        %v932 = vadd.f32 %v386, %v870
        %v933 = vadd.f32 %v387, %v872
        %v934 = vadd.f32 %v388, %v876
        %v935 = vadd.f32 %v389, %v878
        %v936 = vadd.f32 %v390, %v882
        %v937 = vadd.f32 %v391, %v884
        %v938 = vadd.f32 %v392, %v888
        %v939 = vadd.f32 %v393, %v890
        %v940 = vadd.f32 %v394, %v894
        %v941 = vadd.f32 %v395, %v896
        %v942 = vadd.f32 %v396, %v900
        %v943 = vadd.f32 %v397, %v902
        %v944 = vadd.f32 %v398, %v906
        %v945 = vadd.f32 %v399, %v908
        %v946 = vadd.f32 %v400, %v912
        %v947 = vadd.f32 %v401, %v914
        %948 = vst [vmem:[%s316] sm:$0xff] %v916
        %949 = vst [vmem:[%s316 + $0x8] sm:$0xff] %v917
        %950 = vst [vmem:[%s316 + $0x10] sm:$0xff] %v918
        %951 = vst [vmem:[%s316 + $0x18] sm:$0xff] %v919
        %952 = vst [vmem:[%s316 + $0x20] sm:$0xff] %v920
        %953 = vst [vmem:[%s316 + $0x28] sm:$0xff] %v921
        %954 = vst [vmem:[%s316 + $0x30] sm:$0xff] %v922
        %955 = vst [vmem:[%s316 + $0x38] sm:$0xff] %v923
        %956 = vst [vmem:[%s316 + $0x40] sm:$0xff] %v924
        %957 = vst [vmem:[%s316 + $0x48] sm:$0xff] %v925
        %958 = vst [vmem:[%s316 + $0x50] sm:$0xff] %v926
        %959 = vst [vmem:[%s316 + $0x58] sm:$0xff] %v927
        %960 = vst [vmem:[%s316 + $0x60] sm:$0xff] %v928
        %961 = vst [vmem:[%s316 + $0x68] sm:$0xff] %v929
        %962 = vst [vmem:[%s316 + $0x70] sm:$0xff] %v930
        %963 = vst [vmem:[%s316 + $0x78] sm:$0xff] %v931
        %964 = vst [vmem:[%s316 + $0x80] sm:$0xff] %v932
        %965 = vst [vmem:[%s316 + $0x88] sm:$0xff] %v933
        %966 = vst [vmem:[%s316 + $0x90] sm:$0xff] %v934
        %967 = vst [vmem:[%s316 + $0x98] sm:$0xff] %v935
        %968 = vst [vmem:[%s316 + $0xa0] sm:$0xff] %v936
        %969 = vst [vmem:[%s316 + $0xa8] sm:$0xff] %v937
        %970 = vst [vmem:[%s316 + $0xb0] sm:$0xff] %v938
        %971 = vst [vmem:[%s316 + $0xb8] sm:$0xff] %v939
        %972 = vst [vmem:[%s316 + $0xc0] sm:$0xff] %v940
        %973 = vst [vmem:[%s316 + $0xc8] sm:$0xff] %v941
        %974 = vst [vmem:[%s316 + $0xd0] sm:$0xff] %v942
        %975 = vst [vmem:[%s316 + $0xd8] sm:$0xff] %v943
        %976 = vst [vmem:[%s316 + $0xe0] sm:$0xff] %v944
        %977 = vst [vmem:[%s316 + $0xe8] sm:$0xff] %v945
        %978 = vst [vmem:[%s316 + $0xf0] sm:$0xff] %v946
        %979 = vst [vmem:[%s316 + $0xf8] sm:$0xff] %v947
        %p980 = scmp.eq.s32.totalorder %s31, 1
        // Predicated region
        $region49: #{tpu_custom_call.1} parent=35 // pred_check
          %p981 = pneg %p980
        $region50: #{tpu_custom_call.1} parent=35 // pred_check_branch
          %983 = sbr.rel (%p981) target = $region52
        $region51: #{tpu_custom_call.1} parent=35 // pred_region
          %v984 = vld [vmem:[%s316] sm:$0xff]
          %v985 = vld [vmem:[%s316 + $0x8] sm:$0xff]
          %v986 = vld [vmem:[%s316 + $0x10] sm:$0xff]
          %v987 = vld [vmem:[%s316 + $0x18] sm:$0xff]
          %v988 = vld [vmem:[%s316 + $0x20] sm:$0xff]
          %v989 = vld [vmem:[%s316 + $0x28] sm:$0xff]
          %v990 = vld [vmem:[%s316 + $0x30] sm:$0xff]
          %v991 = vld [vmem:[%s316 + $0x38] sm:$0xff]
          %v992 = vld [vmem:[%s316 + $0x40] sm:$0xff]
          %v993 = vld [vmem:[%s316 + $0x48] sm:$0xff]
          %v994 = vld [vmem:[%s316 + $0x50] sm:$0xff]
          %v995 = vld [vmem:[%s316 + $0x58] sm:$0xff]
          %v996 = vld [vmem:[%s316 + $0x60] sm:$0xff]
          %v997 = vld [vmem:[%s316 + $0x68] sm:$0xff]
          %v998 = vld [vmem:[%s316 + $0x70] sm:$0xff]
          %v999 = vld [vmem:[%s316 + $0x78] sm:$0xff]
          %v1000 = vld [vmem:[%s316 + $0x80] sm:$0xff]
          %v1001 = vld [vmem:[%s316 + $0x88] sm:$0xff]
          %v1002 = vld [vmem:[%s316 + $0x90] sm:$0xff]
          %v1003 = vld [vmem:[%s316 + $0x98] sm:$0xff]
          %v1004 = vld [vmem:[%s316 + $0xa0] sm:$0xff]
          %v1005 = vld [vmem:[%s316 + $0xa8] sm:$0xff]
          %v1006 = vld [vmem:[%s316 + $0xb0] sm:$0xff]
          %v1007 = vld [vmem:[%s316 + $0xb8] sm:$0xff]
          %v1008 = vld [vmem:[%s316 + $0xc0] sm:$0xff]
          %v1009 = vld [vmem:[%s316 + $0xc8] sm:$0xff]
          %v1010 = vld [vmem:[%s316 + $0xd0] sm:$0xff]
          %v1011 = vld [vmem:[%s316 + $0xd8] sm:$0xff]
          %v1012 = vld [vmem:[%s316 + $0xe0] sm:$0xff]
          %v1013 = vld [vmem:[%s316 + $0xe8] sm:$0xff]
          %v1014 = vld [vmem:[%s316 + $0xf0] sm:$0xff]
          %v1015 = vld [vmem:[%s316 + $0xf8] sm:$0xff]
          %v1016 = vld [vmem:[%s325] sm:$0xff]
          %v1017 = vld [vmem:[%s325 + $0x8] sm:$0xff]
          %v1018 = vld [vmem:[%s325 + $0x10] sm:$0xff]
          %v1019 = vld [vmem:[%s325 + $0x18] sm:$0xff]
          %v1020 = vld [vmem:[%s325 + $0x20] sm:$0xff]
          %v1021 = vld [vmem:[%s325 + $0x28] sm:$0xff]
          %v1022 = vld [vmem:[%s325 + $0x30] sm:$0xff]
          %v1023 = vld [vmem:[%s325 + $0x38] sm:$0xff]
          %v1024 = vld [vmem:[%s325 + $0x40] sm:$0xff]
          %v1025 = vld [vmem:[%s325 + $0x48] sm:$0xff]
          %v1026 = vld [vmem:[%s325 + $0x50] sm:$0xff]
          %v1027 = vld [vmem:[%s325 + $0x58] sm:$0xff]
          %v1028 = vld [vmem:[%s325 + $0x60] sm:$0xff]
          %v1029 = vld [vmem:[%s325 + $0x68] sm:$0xff]
          %v1030 = vld [vmem:[%s325 + $0x70] sm:$0xff]
          %v1031 = vld [vmem:[%s325 + $0x78] sm:$0xff]
          %v1032 = vld [vmem:[%s330] sm:$0x3]
          %1034 = vset.pattern.permute.xlu0 0
          %1035 = vperm.xlu0 %1034, %v1016
          %v1036 = vpop.permute.xlu0 %1035
          %1039 = vset.pattern.permute.xlu0 0
          %1040 = vperm.xlu0 %1039, %v1017
          %v1041 = vpop.permute.xlu0 %1040
          %1044 = vset.pattern.permute.xlu0 0
          %1045 = vperm.xlu0 %1044, %v1018
          %v1046 = vpop.permute.xlu0 %1045
          %1049 = vset.pattern.permute.xlu0 0
          %1050 = vperm.xlu0 %1049, %v1019
          %v1051 = vpop.permute.xlu0 %1050
          %1054 = vset.pattern.permute.xlu0 0
          %1055 = vperm.xlu0 %1054, %v1020
          %v1056 = vpop.permute.xlu0 %1055
          %1059 = vset.pattern.permute.xlu0 0
          %1060 = vperm.xlu0 %1059, %v1021
          %v1061 = vpop.permute.xlu0 %1060
          %1064 = vset.pattern.permute.xlu0 0
          %1065 = vperm.xlu0 %1064, %v1022
          %v1066 = vpop.permute.xlu0 %1065
          %1069 = vset.pattern.permute.xlu0 0
          %1070 = vperm.xlu0 %1069, %v1023
          %v1071 = vpop.permute.xlu0 %1070
          %1074 = vset.pattern.permute.xlu0 0
          %1075 = vperm.xlu0 %1074, %v1024
          %v1076 = vpop.permute.xlu0 %1075
          %1079 = vset.pattern.permute.xlu0 0
          %1080 = vperm.xlu0 %1079, %v1025
          %v1081 = vpop.permute.xlu0 %1080
          %1084 = vset.pattern.permute.xlu0 0
          %1085 = vperm.xlu0 %1084, %v1026
          %v1086 = vpop.permute.xlu0 %1085
          %1089 = vset.pattern.permute.xlu0 0
          %1090 = vperm.xlu0 %1089, %v1027
          %v1091 = vpop.permute.xlu0 %1090
          %1094 = vset.pattern.permute.xlu0 0
          %1095 = vperm.xlu0 %1094, %v1028
          %v1096 = vpop.permute.xlu0 %1095
          %1099 = vset.pattern.permute.xlu0 0
          %1100 = vperm.xlu0 %1099, %v1029
          %v1101 = vpop.permute.xlu0 %1100
          %1104 = vset.pattern.permute.xlu0 0
          %1105 = vperm.xlu0 %1104, %v1030
          %v1106 = vpop.permute.xlu0 %1105
          %1109 = vset.pattern.permute.xlu0 0
          %1110 = vperm.xlu0 %1109, %v1031
          %v1111 = vpop.permute.xlu0 %1110
          %v1114 = vlaneseq
          %v1115 = vshrl.u32 %v1114, 7
          %v1116 = vsub.s32 0, %v1115
          %v1117 = vrot.slane %v1032, %v1116
          %v1118 = vlaneseq
          %v1119 = vshrl.u32 %v1118, 7
          %v1120 = vsub.s32 1, %v1119
          %v1121 = vrot.slane %v1032, %v1120
          %v1124 = vmul.f32 %v1036, %v1117
          %v1125 = vmul.f32 %v1036, %v1121
          %v1126 = vmul.f32 %v1041, %v1117
          %v1127 = vmul.f32 %v1041, %v1121
          %v1128 = vmul.f32 %v1046, %v1117
          %v1129 = vmul.f32 %v1046, %v1121
          %v1130 = vmul.f32 %v1051, %v1117
          %v1131 = vmul.f32 %v1051, %v1121
          %v1132 = vmul.f32 %v1056, %v1117
          %v1133 = vmul.f32 %v1056, %v1121
          %v1134 = vmul.f32 %v1061, %v1117
          %v1135 = vmul.f32 %v1061, %v1121
          %v1136 = vmul.f32 %v1066, %v1117
          %v1137 = vmul.f32 %v1066, %v1121
          %v1138 = vmul.f32 %v1071, %v1117
          %v1139 = vmul.f32 %v1071, %v1121
          %v1140 = vmul.f32 %v1076, %v1117
          %v1141 = vmul.f32 %v1076, %v1121
          %v1142 = vmul.f32 %v1081, %v1117
          %v1143 = vmul.f32 %v1081, %v1121
          %v1144 = vmul.f32 %v1086, %v1117
          %v1145 = vmul.f32 %v1086, %v1121
          %v1146 = vmul.f32 %v1091, %v1117
          %v1147 = vmul.f32 %v1091, %v1121
          %v1148 = vmul.f32 %v1096, %v1117
          %v1149 = vmul.f32 %v1096, %v1121
          %v1150 = vmul.f32 %v1101, %v1117
          %v1151 = vmul.f32 %v1101, %v1121
          %v1152 = vmul.f32 %v1106, %v1117
          %v1153 = vmul.f32 %v1106, %v1121
          %v1154 = vmul.f32 %v1111, %v1117
          %v1155 = vmul.f32 %v1111, %v1121
          %v1156 = vmul.f32 %v984, %v1124
          %v1157 = vmul.f32 %v985, %v1125
          %v1158 = vmul.f32 %v986, %v1126
          %v1159 = vmul.f32 %v987, %v1127
          %v1160 = vmul.f32 %v988, %v1128
          %v1161 = vmul.f32 %v989, %v1129
          %v1162 = vmul.f32 %v990, %v1130
          %v1163 = vmul.f32 %v991, %v1131
          %v1164 = vmul.f32 %v992, %v1132
          %v1165 = vmul.f32 %v993, %v1133
          %v1166 = vmul.f32 %v994, %v1134
          %v1167 = vmul.f32 %v995, %v1135
          %v1168 = vmul.f32 %v996, %v1136
          %v1169 = vmul.f32 %v997, %v1137
          %v1170 = vmul.f32 %v998, %v1138
          %v1171 = vmul.f32 %v999, %v1139
          %v1172 = vmul.f32 %v1000, %v1140
          %v1173 = vmul.f32 %v1001, %v1141
          %v1174 = vmul.f32 %v1002, %v1142
          %v1175 = vmul.f32 %v1003, %v1143
          %v1176 = vmul.f32 %v1004, %v1144
          %v1177 = vmul.f32 %v1005, %v1145
          %v1178 = vmul.f32 %v1006, %v1146
          %v1179 = vmul.f32 %v1007, %v1147
          %v1180 = vmul.f32 %v1008, %v1148
          %v1181 = vmul.f32 %v1009, %v1149
          %v1182 = vmul.f32 %v1010, %v1150
          %v1183 = vmul.f32 %v1011, %v1151
          %v1184 = vmul.f32 %v1012, %v1152
          %v1185 = vmul.f32 %v1013, %v1153
          %v1186 = vmul.f32 %v1014, %v1154
          %v1187 = vmul.f32 %v1015, %v1155
          %1188 = vst [vmem:[%s316] sm:$0xff] %v1156
          %1189 = vst [vmem:[%s316 + $0x8] sm:$0xff] %v1157
          %1190 = vst [vmem:[%s316 + $0x10] sm:$0xff] %v1158
          %1191 = vst [vmem:[%s316 + $0x18] sm:$0xff] %v1159
          %1192 = vst [vmem:[%s316 + $0x20] sm:$0xff] %v1160
          %1193 = vst [vmem:[%s316 + $0x28] sm:$0xff] %v1161
          %1194 = vst [vmem:[%s316 + $0x30] sm:$0xff] %v1162
          %1195 = vst [vmem:[%s316 + $0x38] sm:$0xff] %v1163
          %1196 = vst [vmem:[%s316 + $0x40] sm:$0xff] %v1164
          %1197 = vst [vmem:[%s316 + $0x48] sm:$0xff] %v1165
          %1198 = vst [vmem:[%s316 + $0x50] sm:$0xff] %v1166
          %1199 = vst [vmem:[%s316 + $0x58] sm:$0xff] %v1167
          %1200 = vst [vmem:[%s316 + $0x60] sm:$0xff] %v1168
          %1201 = vst [vmem:[%s316 + $0x68] sm:$0xff] %v1169
          %1202 = vst [vmem:[%s316 + $0x70] sm:$0xff] %v1170
          %1203 = vst [vmem:[%s316 + $0x78] sm:$0xff] %v1171
          %1204 = vst [vmem:[%s316 + $0x80] sm:$0xff] %v1172
          %1205 = vst [vmem:[%s316 + $0x88] sm:$0xff] %v1173
          %1206 = vst [vmem:[%s316 + $0x90] sm:$0xff] %v1174
          %1207 = vst [vmem:[%s316 + $0x98] sm:$0xff] %v1175
          %1208 = vst [vmem:[%s316 + $0xa0] sm:$0xff] %v1176
          %1209 = vst [vmem:[%s316 + $0xa8] sm:$0xff] %v1177
          %1210 = vst [vmem:[%s316 + $0xb0] sm:$0xff] %v1178
          %1211 = vst [vmem:[%s316 + $0xb8] sm:$0xff] %v1179
          %1212 = vst [vmem:[%s316 + $0xc0] sm:$0xff] %v1180
          %1213 = vst [vmem:[%s316 + $0xc8] sm:$0xff] %v1181
          %1214 = vst [vmem:[%s316 + $0xd0] sm:$0xff] %v1182
          %1215 = vst [vmem:[%s316 + $0xd8] sm:$0xff] %v1183
          %1216 = vst [vmem:[%s316 + $0xe0] sm:$0xff] %v1184
          %1217 = vst [vmem:[%s316 + $0xe8] sm:$0xff] %v1185
          %1218 = vst [vmem:[%s316 + $0xf0] sm:$0xff] %v1186
          %1219 = vst [vmem:[%s316 + $0xf8] sm:$0xff] %v1187
        $region52: #{tpu_custom_call.1} parent=35 // pred_fallthru
          _
        %s1220 = sand.u32 %s161, 1
        %s1221 = scalar_lea.sflag [#allocation4], %s1220
        %s1222 = sand.u32 %s161, 1
        %s1223 = smul.addr %s1222, 256
        %s1224 = scalar_lea.vmem [#allocation7], %s1223
        // Predicated region
        $region53: #{tpu_custom_call.1} parent=35 // pred_check
          %p1225 = pneg %p171
        $region54: #{tpu_custom_call.1} parent=35 // pred_check_branch
          %1227 = sbr.rel (%p1225) target = $region56
        $region55: #{tpu_custom_call.1} parent=35 // pred_region
          %s1228 = smul.u32 16, %s29
          %s1229 = smul.u32 2, %s30
          %s1231 = ssub.s32 4096, 4096
          %1232 = vsyncadd %s1221, %s1231
          %s1233 = smul.addr %s1228, 2
          %s1234 = sadd.s32 %s1229, %s1233
          %s1235 = smul.addr %s1234, 128
          %s1236 = scalar_lea.hbm %s4, %s1235
          %s1237 = sshll.u32 %s1224, 4
          %s1238 = int_to_ptr.vmem [resolvable:$true] %s1237
          %1243 = dma.vmem_to_hbm [thread:$0]  %s1238, 4096, %s1236, %s1221, 256, 256, 16
        $region56: #{tpu_custom_call.1} parent=35 // pred_fallthru
          _
      $region36: #{tpu_custom_call.1} parent=5 // pred_fallthru
        _
      %p1244 = scmp.le.s32.totalorder 2, %s19
      // Predicated region
      $region57: #{tpu_custom_call.1} parent=5 // pred_check
        %p1245 = pneg %p1244
      $region58: #{tpu_custom_call.1} parent=5 // pred_check_branch
        %1247 = sbr.rel (%p1245) target = $region60
      $region59: #{tpu_custom_call.1} parent=5 // pred_region
        %s1248 = ssub.s32 %s19, 2
        // Predicated region
        $region61: #{tpu_custom_call.1} parent=59 // pred_check
          %p1249 = pneg %p177
        $region62: #{tpu_custom_call.1} parent=59 // pred_check_branch
          %1251 = sbr.rel (%p1249) target = $region64
        $region63: #{tpu_custom_call.1} parent=59 // pred_region
          %s1252 = sand.u32 %s162, 1
          %s1253 = scalar_lea.sflag [#allocation4], %s1252
          %s1254 = sand.u32 %s162, 1
          %s1255 = smul.addr %s1254, 256
          %s1256 = scalar_lea.vmem [#allocation7], %s1255
          %1257 = dma.done %s1253, 4096
        $region64: #{tpu_custom_call.1} parent=59 // pred_fallthru
          _
      $region60: #{tpu_custom_call.1} parent=5 // pred_fallthru
        _
    $region6: #{tpu_custom_call.1} parent=1 // loop_footer
      %s23 = sadd.s32 1, %s19
    $region7: #{tpu_custom_call.1} parent=1 // loop_footer_branch
      %18 = sbr.rel target = $region3
    $region8: #{tpu_custom_call.1} parent=1 // loop_exit
      _
    %1258 = vsyncpa [#allocation3], 1
    %s1259 = scalar_lea.sflag [#allocation3], 1
    %1260 = vsyncpa %s1259, 1
    %1261 = vsyncpa [#allocation6], 1
    %s1262 = scalar_lea.sflag [#allocation6], 1
    %1263 = vsyncpa %s1262, 1
    %1264 = vsyncpa [#allocation4], 1
    %s1265 = scalar_lea.sflag [#allocation4], 1
    %1266 = vsyncpa %s1265, 1

</llo_original>
